<compile_context>
chip_gen: v7x
topology: tpu7x:2x2x1
jax: 0.10.0
libtpu: 0.0.40
codegen_flags: <defaults>
</compile_context>

<pallas_src>
import functools
import warnings

import jax
import jax.numpy as jnp
from jax.experimental import pallas as pl
from jax.experimental.pallas import tpu as pltpu

LN_EPS = 1e-5


def _cdiv(a, b):
    return -(-a // b)


def _round_up(n, m):
    return _cdiv(n, m) * m


# ----------------------------------------------------------------------------- hardware probes

def _vmem_budget_bytes():
    """Generation-aware usable VMEM budget: ~100 MiB on v5e/v6e (128 MiB physical),
    ~50 MiB on v7x (64 MiB physical) - leaves ~22% headroom for Mosaic internal scratch."""
    cap = None
    try:
        info = pltpu.get_tpu_info()
        for name in ("vmem_capacity_bytes", "vmem_size_bytes", "vmem_bytes"):
            v = getattr(info, name, None)
            if v:
                cap = int(v)
                break
    except Exception:
        cap = None
    if not cap:
        cap = 64 * 1024 * 1024  # conservative fallback: correct for v7x, merely tight elsewhere
    return (cap * 25) // 32


_PIPELINE_MODE_OK = None


def _pipeline_mode_supported():
    """One-time capability probe for BlockSpec(pipeline_mode=pl.Buffered(k)).

    Uses a tiny *fixed-shape* kernel, so a failure here can only mean "pipeline_mode
    unsupported by this build" - never a real VMEM OOM on user shapes (review item)."""
    global _PIPELINE_MODE_OK
    if _PIPELINE_MODE_OK is not None:
        return _PIPELINE_MODE_OK
    if not hasattr(pl, "Buffered"):
        _PIPELINE_MODE_OK = False
        return False

    def probe_kernel(a_ref, c_ref, o_ref):
        o_ref[...] = a_ref[...] + c_ref[...]

    try:
        a = jnp.zeros((32, 128), jnp.float32)
        c = jnp.zeros((8, 128), jnp.float32)
        out = pl.pallas_call(
            probe_kernel,
            out_shape=jax.ShapeDtypeStruct((32, 128), jnp.float32),
            grid_spec=pltpu.PrefetchScalarGridSpec(
                num_scalar_prefetch=0,
                grid=(4,),
                in_specs=[pl.BlockSpec((8, 128), lambda i: (i, 0),
                                       pipeline_mode=pl.Buffered(3)),
                          pl.BlockSpec((8, 128), lambda i: (0, 0),
                                       pipeline_mode=pl.Buffered(1))],
                out_specs=pl.BlockSpec((8, 128), lambda i: (i, 0),
                                       pipeline_mode=pl.Buffered(3))),
        )(a, c)
        jax.block_until_ready(out)
        _PIPELINE_MODE_OK = True
    except Exception as e:  # capability-only failure: tiny fixed shapes, cannot be a VMEM OOM
        warnings.warn("pl.Buffered pipeline_mode unsupported by this JAX build; using default "
                      f"double-buffering ({type(e).__name__}: {e})")
        _PIPELINE_MODE_OK = False
    return _PIPELINE_MODE_OK


# ----------------------------------------------------------------------------- kernel helpers

def _ln_relu(v, gamma, beta):
    """LayerNorm (biased variance, eps=1e-5, PyTorch semantics) followed by ReLU.

    One-pass statistics: sum(v) and sum(v*v) are reduced from the same operand so both lane
    reductions issue back-to-back on the XLU, and gamma*rsqrt(var+eps) is folded into a single
    per-row multiplier."""
    n = v.shape[-1]
    s1 = jnp.sum(v, axis=-1, keepdims=True)
    s2 = jnp.sum(v * v, axis=-1, keepdims=True)
    mu = s1 * (1.0 / n)
    var = jnp.maximum(s2 * (1.0 / n) - mu * mu, 0.0)
    g_scaled = gamma * jax.lax.rsqrt(var + LN_EPS)
    return jnp.maximum((v - mu) * g_scaled + beta, 0.0)


def _resident_kernel(x_ref, g1_ref, b1_ref, w1t_ref, bl1_ref,
                     g2_ref, b2_ref, w2t_ref, bl2_ref, o_ref):
    f32 = jnp.float32
    mm = w1t_ref.dtype          # GEMM operand dtype (bf16 default; f32 for the exact path)

    h = _ln_relu(x_ref[...].astype(f32), g1_ref[...], b1_ref[...])
    h = jnp.dot(h.astype(mm), w1t_ref[...], preferred_element_type=f32) + bl1_ref[...]
    h = _ln_relu(h, g2_ref[...], b2_ref[...])
    # TODO(synk): training-mode dropout would use pltpu.prng_seed + prng_random_bits here;
    # eval mode == identity, matching the PyTorch module in .eval().
    h = jnp.dot(h.astype(mm), w2t_ref[...], preferred_element_type=f32) + bl2_ref[...]

    # Residual: re-read the (already VMEM-resident) input block instead of keeping an f32 copy
    # of x live across both GEMMs - shorter live range, less spill pressure.
    o_ref[...] = (x_ref[...].astype(f32) + h).astype(o_ref.dtype)


def _streamed_kernel(x_ref, g1_ref, b1_ref, bl1_ref, g2_ref, b2_ref, bl2_ref,
                     w1t_hbm, w2t_hbm, o_ref, hs_ref, acc_ref, wbuf, sem):
    """Large-hidden fallback: weights live in HBM; (hidden, tn) column strips of W^T are
    manually double-buffered into VMEM while the row tile's activations stay resident."""
    f32 = jnp.float32
    hidden = x_ref.shape[-1]
    tn = wbuf.shape[-1]
    n_steps = hidden // tn
    mm = wbuf.dtype

    def start_fetch(w_hbm, j, slot):
        pltpu.make_async_copy(w_hbm.at[:, pl.ds(j * tn, tn)], wbuf.at[slot], sem.at[slot]).start()

    def wait_fetch(slot):
        pltpu.make_async_copy(w1t_hbm.at[:, pl.ds(0, tn)], wbuf.at[slot], sem.at[slot]).wait()

    # Kick off the first W1^T strip so its DMA overlaps LayerNorm1 + ReLU.
    start_fetch(w1t_hbm, 0, 0)
    hs_ref[...] = _ln_relu(x_ref[...].astype(f32), g1_ref[...], b1_ref[...]).astype(mm)

    # GEMM #1: stream W1^T column strips (static unroll -> all strip offsets are static /
    # lane-aligned), accumulate column strips of the f32 intermediate.
    for j in range(n_steps):
        slot = j & 1
        if j + 1 < n_steps:
            start_fetch(w1t_hbm, j + 1, 1 - slot)
        wait_fetch(slot)
        acc_ref[:, j * tn:(j + 1) * tn] = (
            jnp.dot(hs_ref[...], wbuf[slot], preferred_element_type=f32)
            + bl1_ref[:, j * tn:(j + 1) * tn])

    # Prime the first W2^T strip so its DMA overlaps LayerNorm2 + ReLU.
    start_fetch(w2t_hbm, 0, 0)
    hs_ref[...] = _ln_relu(acc_ref[...], g2_ref[...], b2_ref[...]).astype(mm)
    # TODO(synk): training-mode dropout would mask hs_ref here; eval mode == identity.

    # GEMM #2 + residual: same streaming; output written as lane-aligned column strips,
    # re-reading x_ref column strips for the residual add.
    for j in range(n_steps):
        slot = j & 1
        if j + 1 < n_steps:
            start_fetch(w2t_hbm, j + 1, 1 - slot)
        wait_fetch(slot)
        col = (jnp.dot(hs_ref[...], wbuf[slot], preferred_element_type=f32)
               + bl2_ref[:, j * tn:(j + 1) * tn]
               + x_ref[:, j * tn:(j + 1) * tn].astype(f32))
        o_ref[:, j * tn:(j + 1) * tn] = col.astype(o_ref.dtype)


# ----------------------------------------------------------------------------- parameter prep

def prepare_params(params, matmul_dtype=jnp.bfloat16):
    """One-time parameter prep (call once, reuse across calls): hoists the hidden x hidden
    transposes and the GEMM-dtype casts out of the per-call path.

    matmul_dtype=bf16 is the default on ALL generations (v5e/v6e/v7x MXUs are bf16-native);
    pass jnp.float32 for an exact-check path.
    # TODO(synk): optional fp8 (e4m3) weights with per-channel scales on v7x would halve
    # weight residency again.
    # TODO(synk): if hidden % 128 != 0, padding hidden to 128/256 (zero-padded W/gamma/beta/bias,
    # true-hidden LN denominators + lane mask in-kernel) would restore lane-dense stores."""
    hidden = params["w1"].shape[0]
    f32 = jnp.float32
    return {
        "g1": jnp.asarray(params["ln1_gamma"], f32).reshape(1, hidden),
        "b1": jnp.asarray(params["ln1_beta"], f32).reshape(1, hidden),
        "w1t": jnp.asarray(params["w1"]).T.astype(matmul_dtype),   # (in, out): kernel does h @ w1t
        "bl1": jnp.asarray(params["b1"], f32).reshape(1, hidden),
        "g2": jnp.asarray(params["ln2_gamma"], f32).reshape(1, hidden),
        "b2": jnp.asarray(params["ln2_beta"], f32).reshape(1, hidden),
        "w2t": jnp.asarray(params["w2"]).T.astype(matmul_dtype),
        "bl2": jnp.asarray(params["b2"], f32).reshape(1, hidden),
    }


# ----------------------------------------------------------------------------- pallas_call wrappers

@functools.partial(jax.jit, static_argnames=("tile", "w_single_buf", "deep_rows", "vmem_limit"))
def _resident_impl(x, prep, tile, w_single_buf, deep_rows, vmem_limit):
    batch, seq, hidden = x.shape
    rows = batch * seq
    x2d = x.reshape(rows, hidden)
    x_item = jnp.dtype(x.dtype).itemsize
    w_item = jnp.dtype(prep["w1t"].dtype).itemsize

    row_kwargs = {"pipeline_mode": pl.Buffered(3)} if deep_rows else {}
    inv_kwargs = {"pipeline_mode": pl.Buffered(1)} if w_single_buf else {}
    row_spec = pl.BlockSpec((tile, hidden), lambda i: (i, 0), **row_kwargs)
    out_spec = pl.BlockSpec((tile, hidden), lambda i: (i, 0), **row_kwargs)
    vec_spec = pl.BlockSpec((1, hidden), lambda i: (0, 0), **inv_kwargs)
    mat_spec = pl.BlockSpec((hidden, hidden), lambda i: (0, 0), **inv_kwargs)

    grid = (_cdiv(rows, tile),)  # no padding: the single partial last block is masked by Pallas

    cost = pl.CostEstimate(
        flops=4 * rows * hidden * hidden,                 # two hidden x hidden GEMMs
        transcendentals=2 * rows,                         # two rsqrt per row
        bytes_accessed=(2 * rows * hidden * x_item
                        + 2 * hidden * hidden * w_item
                        + 6 * hidden * 4))

    out2d = pl.pallas_call(
        _resident_kernel,
        out_shape=jax.ShapeDtypeStruct((rows, hidden), x.dtype),
        grid_spec=pltpu.PrefetchScalarGridSpec(
            num_scalar_prefetch=0,
            grid=grid,
            in_specs=[row_spec,            # x tile
                      vec_spec, vec_spec,  # ln1 gamma / beta
                      mat_spec, vec_spec,  # W1^T, b1
                      vec_spec, vec_spec,  # ln2 gamma / beta
                      mat_spec, vec_spec], # W2^T, b2
            out_specs=out_spec),
        compiler_params=pltpu.CompilerParams(
            dimension_semantics=("parallel",),
            vmem_limit_bytes=vmem_limit),
        cost_estimate=cost,
    )(x2d, prep["g1"], prep["b1"], prep["w1t"], prep["bl1"],
      prep["g2"], prep["b2"], prep["w2t"], prep["bl2"])
    return out2d.reshape(batch, seq, hidden)


@functools.partial(jax.jit, static_argnames=("tile", "tn", "w_single_buf", "vmem_limit"))
def _streamed_impl(x, prep, tile, tn, w_single_buf, vmem_limit):
    batch, seq, hidden = x.shape
    rows = batch * seq
    x2d = x.reshape(rows, hidden)
    mm_dtype = prep["w1t"].dtype
    x_item = jnp.dtype(x.dtype).itemsize
    w_item = jnp.dtype(mm_dtype).itemsize

    inv_kwargs = {"pipeline_mode": pl.Buffered(1)} if w_single_buf else {}
    row_spec = pl.BlockSpec((tile, hidden), lambda i: (i, 0))
    vec_spec = pl.BlockSpec((1, hidden), lambda i: (0, 0), **inv_kwargs)
    any_spec = pl.BlockSpec(memory_space=pl.ANY)          # weights stay in HBM

    grid = (_cdiv(rows, tile),)

    cost = pl.CostEstimate(
        flops=4 * rows * hidden * hidden,
        transcendentals=2 * rows,
        bytes_accessed=(2 * rows * hidden * x_item
                        + 2 * grid[0] * hidden * hidden * w_item   # weights re-streamed per row tile
                        + 6 * hidden * 4))

    out2d = pl.pallas_call(
        _streamed_kernel,
        out_shape=jax.ShapeDtypeStruct((rows, hidden), x.dtype),
        grid_spec=pltpu.PrefetchScalarGridSpec(
            num_scalar_prefetch=0,
            grid=grid,
            in_specs=[row_spec,                       # x tile
                      vec_spec, vec_spec, vec_spec,   # ln1 gamma / beta, b1
                      vec_spec, vec_spec, vec_spec,   # ln2 gamma / beta, b2
                      any_spec, any_spec],            # W1^T, W2^T (HBM)
            out_specs=row_spec,
            scratch_shapes=[pltpu.VMEM((tile, hidden), mm_dtype),   # LN/ReLU output (GEMM lhs)
                            pltpu.VMEM((tile, hidden), jnp.float32),# f32 GEMM-1 output
                            pltpu.VMEM((2, hidden, tn), mm_dtype),  # double-buffered weight strips
                            pltpu.SemaphoreType.DMA((2,))]),
        compiler_params=pltpu.CompilerParams(
            dimension_semantics=("parallel",),
            vmem_limit_bytes=vmem_limit),
        cost_estimate=cost,
    )(x2d, prep["g1"], prep["b1"], prep["bl1"],
      prep["g2"], prep["b2"], prep["bl2"], prep["w1t"], prep["w2t"])
    return out2d.reshape(batch, seq, hidden)


def residual_block(x, prepared_params, tile_rows=512, force_streamed=False):
    """Fused ResidualBlock forward.

    x: (batch, seq, hidden); dtype is preserved (f32 or bf16 activations both work - LN /
    residual math is always f32 in-kernel).  prepared_params: output of prepare_params().
    tile_rows: upper bound on the row-tile; 512 is fine on all generations (the derivation
    below keeps >=2 grid steps for v7x's two TensorCores when rows allow it)."""
    batch, seq, hidden = x.shape
    rows = batch * seq
    x_item = jnp.dtype(x.dtype).itemsize
    w_item = jnp.dtype(prepared_params["w1t"].dtype).itemsize

    budget = _vmem_budget_bytes()
    buffered_ok = _pipeline_mode_supported()
    w_single_buf = buffered_ok

    # Row tile: multiple of 8 (sublane); keep >=2 grid steps when rows allow so the "parallel"
    # row axis can be sharded across v7x's two TensorCores.
    max_tile = _round_up(rows, 8)
    tile = min(_round_up(int(tile_rows), 8), max_tile)
    if rows >= 256:
        tile = min(tile, _round_up(_cdiv(rows, 2), 128))
    tile = max(8, tile)

    deep_rows = buffered_ok and hidden <= 512   # mem-bound small-hidden regime: 3-deep row pipeline

    def resident_vmem(t):
        w_bufs = 1 if w_single_buf else 2
        row_bufs = 3 if deep_rows else 2
        return int(1.2 * (2 * w_bufs * hidden * hidden * w_item     # resident W1^T, W2^T
                          + 6 * w_bufs * hidden * 4                  # gamma/beta/bias vectors
                          + 2 * row_bufs * t * hidden * x_item       # pipelined in/out row tiles
                          + 4 * t * hidden * 4))                     # f32 temporaries

    if not force_streamed and resident_vmem(tile) <= budget:
        return _resident_impl(x, prepared_params, tile=tile, w_single_buf=w_single_buf,
                              deep_rows=deep_rows, vmem_limit=budget)

    # Streamed-weight fallback (large hidden, e.g. bf16 hidden >~3k on v7x's 64 MiB VMEM).
    tn = hidden
    for cand in (512, 256, 128):
        if hidden % cand == 0:
            tn = cand
            break

    def streamed_vmem(t):
        return int(1.2 * (t * hidden * w_item            # LN/ReLU output scratch
                          + t * hidden * 4               # f32 GEMM-1 accumulator scratch
                          + 2 * hidden * tn * w_item     # double-buffered weight strips
                          + 2 * 2 * t * hidden * x_item  # pipelined in/out row tiles
                          + 6 * hidden * 4
                          + 3 * t * hidden * 4))         # f32 temporaries

    while tile > 8 and streamed_vmem(tile) > budget:
        tile = max(8, _round_up(tile // 2, 8))

    return _streamed_impl(x, prepared_params, tile=tile, tn=tn, w_single_buf=w_single_buf,
                          vmem_limit=budget)


# ----------------------------------------------------------------------------- reference & test

def reference(x, params):
    """Pure-JAX reference of the PyTorch module (eval mode)."""
    def ln(v, g, b):
        mu = jnp.mean(v, axis=-1, keepdims=True)
        var = jnp.mean((v - mu) ** 2, axis=-1, keepdims=True)
        return (v - mu) / jnp.sqrt(var + LN_EPS) * g + b

    h = ln(x, params["ln1_gamma"], params["ln1_beta"])
    h = jnp.maximum(h, 0.0)
    h = h @ params["w1"].T + params["b1"]
    h = ln(h, params["ln2_gamma"], params["ln2_beta"])
    h = jnp.maximum(h, 0.0)
    h = h @ params["w2"].T + params["b2"]
    return x + h


def init_params(key, hidden):
    k1, k2, k3, k4 = jax.random.split(key, 4)
    bound = 1.0 / jnp.sqrt(hidden)
    return {
        "ln1_gamma": jnp.ones((hidden,), jnp.float32),
        "ln1_beta": jnp.zeros((hidden,), jnp.float32),
        "w1": jax.random.uniform(k1, (hidden, hidden), jnp.float32, -bound, bound),
        "b1": jax.random.uniform(k2, (hidden,), jnp.float32, -bound, bound),
        "ln2_gamma": jnp.ones((hidden,), jnp.float32),
        "ln2_beta": jnp.zeros((hidden,), jnp.float32),
        "w2": jax.random.uniform(k3, (hidden, hidden), jnp.float32, -bound, bound),
        "b2": jax.random.uniform(k4, (hidden,), jnp.float32, -bound, bound),
    }


if __name__ == "__main__":
    batch, seq, hidden = 2, 8, 32
    key = jax.random.PRNGKey(0)
    kx, kp = jax.random.split(key)
    x = jax.random.normal(kx, (batch, seq, hidden), jnp.float32)
    params = init_params(kp, hidden)
    ref = reference(x, params)

    # Exact path: f32 GEMM operands, resident-weight kernel.
    prep_f32 = prepare_params(params, matmul_dtype=jnp.float32)
    out_f32 = jax.block_until_ready(residual_block(x, prep_f32))
    assert out_f32.shape == x.shape
    assert jnp.allclose(out_f32, ref, atol=1e-4, rtol=1e-4), "f32 resident path mismatch"

    # Streamed-weight fallback path (normally auto-selected only when the two hidden x hidden
    # weights do not fit the per-generation VMEM budget; forced here to exercise it).
    out_str = jax.block_until_ready(residual_block(x, prep_f32, force_streamed=True))
    assert out_str.shape == x.shape
    assert jnp.allclose(out_str, ref, atol=1e-4, rtol=1e-4), "streamed path mismatch"

    # Fast path: bf16 GEMM operands (default on v5e/v6e/v7x), looser tolerance.
    prep_bf16 = prepare_params(params)
    out_bf16 = jax.block_until_ready(residual_block(x, prep_bf16))
    assert out_bf16.shape == x.shape
    assert jnp.allclose(out_bf16, ref, atol=5e-2, rtol=5e-2), "bf16 path mismatch"

    print("KERNEL_OK")
</pallas_src>

<mosaic_0001>
module attributes {stable_mosaic.version = 11 : i64} {
  func.func @_resident_kernel(%arg0: i32, %arg1: memref<16x32xf32, #tpu.memory_space<vmem>>, %arg2: memref<1x32xf32, #tpu.memory_space<vmem>>, %arg3: memref<1x32xf32, #tpu.memory_space<vmem>>, %arg4: memref<32x32xf32, #tpu.memory_space<vmem>>, %arg5: memref<1x32xf32, #tpu.memory_space<vmem>>, %arg6: memref<1x32xf32, #tpu.memory_space<vmem>>, %arg7: memref<1x32xf32, #tpu.memory_space<vmem>>, %arg8: memref<32x32xf32, #tpu.memory_space<vmem>>, %arg9: memref<1x32xf32, #tpu.memory_space<vmem>>, %arg10: memref<16x32xf32, #tpu.memory_space<vmem>>) attributes {dimension_semantics = [#tpu.dimension_semantics<parallel>], iteration_bounds = array<i64: 1>, scalar_prefetch = 0 : i64, scratch_operands = 0 : i64, tpu.core_type = #tpu.core_type<tc>, window_params = [{transform_indices = @transform_0, window_bounds = array<i64: 16, 32>}, {pipeline_mode = #tpu.pipeline_mode<synchronous>, transform_indices = @transform_1, window_bounds = array<i64: 1, 32>}, {pipeline_mode = #tpu.pipeline_mode<synchronous>, transform_indices = @transform_2, window_bounds = array<i64: 1, 32>}, {pipeline_mode = #tpu.pipeline_mode<synchronous>, transform_indices = @transform_3, window_bounds = array<i64: 32, 32>}, {pipeline_mode = #tpu.pipeline_mode<synchronous>, transform_indices = @transform_4, window_bounds = array<i64: 1, 32>}, {pipeline_mode = #tpu.pipeline_mode<synchronous>, transform_indices = @transform_5, window_bounds = array<i64: 1, 32>}, {pipeline_mode = #tpu.pipeline_mode<synchronous>, transform_indices = @transform_6, window_bounds = array<i64: 1, 32>}, {pipeline_mode = #tpu.pipeline_mode<synchronous>, transform_indices = @transform_7, window_bounds = array<i64: 32, 32>}, {pipeline_mode = #tpu.pipeline_mode<synchronous>, transform_indices = @transform_8, window_bounds = array<i64: 1, 32>}, {transform_indices = @transform_9, window_bounds = array<i64: 16, 32>}]} {
    %c0 = arith.constant 0 : index
    %c0_0 = arith.constant 0 : index
    %0 = vector.load %arg1[%c0, %c0_0] : memref<16x32xf32, #tpu.memory_space<vmem>>, vector<16x32xf32>
    %c0_1 = arith.constant 0 : index
    %c0_2 = arith.constant 0 : index
    %1 = vector.load %arg2[%c0_1, %c0_2] : memref<1x32xf32, #tpu.memory_space<vmem>>, vector<1x32xf32>
    %c0_3 = arith.constant 0 : index
    %c0_4 = arith.constant 0 : index
    %2 = vector.load %arg3[%c0_3, %c0_4] : memref<1x32xf32, #tpu.memory_space<vmem>>, vector<1x32xf32>
    %cst = arith.constant dense<0.000000e+00> : vector<16xf32>
    %3 = vector.multi_reduction <add>, %0, %cst [1] : vector<16x32xf32> to vector<16xf32>
    %4 = vector.shape_cast %3 : vector<16xf32> to vector<16x1xf32>
    %5 = arith.mulf %0, %0 : vector<16x32xf32>
    %cst_5 = arith.constant dense<0.000000e+00> : vector<16xf32>
    %6 = vector.multi_reduction <add>, %5, %cst_5 [1] : vector<16x32xf32> to vector<16xf32>
    %7 = vector.shape_cast %6 : vector<16xf32> to vector<16x1xf32>
    %cst_6 = arith.constant 3.125000e-02 : f32
    %8 = vector.broadcast %cst_6 : f32 to vector<16x1xf32>
    %9 = arith.mulf %4, %8 : vector<16x1xf32>
    %cst_7 = arith.constant 3.125000e-02 : f32
    %10 = vector.broadcast %cst_7 : f32 to vector<16x1xf32>
    %11 = arith.mulf %7, %10 : vector<16x1xf32>
    %12 = arith.mulf %9, %9 : vector<16x1xf32>
    %13 = arith.subf %11, %12 : vector<16x1xf32>
    %cst_8 = arith.constant 0.000000e+00 : f32
    %14 = vector.broadcast %cst_8 : f32 to vector<16x1xf32>
    %15 = arith.maximumf %13, %14 : vector<16x1xf32>
    %cst_9 = arith.constant 9.99999974E-6 : f32
    %16 = vector.broadcast %cst_9 : f32 to vector<16x1xf32>
    %17 = arith.addf %15, %16 : vector<16x1xf32>
    %18 = math.rsqrt %17 : vector<16x1xf32>
    %19 = vector.broadcast %1 : vector<1x32xf32> to vector<16x32xf32>
    %20 = vector.broadcast %18 : vector<16x1xf32> to vector<16x32xf32>
    %21 = arith.mulf %19, %20 : vector<16x32xf32>
    %22 = vector.broadcast %9 : vector<16x1xf32> to vector<16x32xf32>
    %23 = arith.subf %0, %22 : vector<16x32xf32>
    %24 = arith.mulf %23, %21 : vector<16x32xf32>
    %25 = vector.broadcast %2 : vector<1x32xf32> to vector<16x32xf32>
    %26 = arith.addf %24, %25 : vector<16x32xf32>
    %cst_10 = arith.constant 0.000000e+00 : f32
    %27 = vector.broadcast %cst_10 : f32 to vector<16x32xf32>
    %28 = arith.maximumf %26, %27 : vector<16x32xf32>
    %c0_11 = arith.constant 0 : index
    %c0_12 = arith.constant 0 : index
    %29 = vector.load %arg4[%c0_11, %c0_12] : memref<32x32xf32, #tpu.memory_space<vmem>>, vector<32x32xf32>
    %cst_13 = arith.constant dense<0.000000e+00> : vector<16x32xf32>
    %30 = tpu.matmul %28, %29, %cst_13 {dimension_numbers = #tpu.dot_dimension_numbers<[1], [0], [0], [1], [0, 0, 1, 1], [], []>} : vector<16x32xf32>, vector<32x32xf32>, vector<16x32xf32> -> vector<16x32xf32>
    %c0_14 = arith.constant 0 : index
    %c0_15 = arith.constant 0 : index
    %31 = vector.load %arg5[%c0_14, %c0_15] : memref<1x32xf32, #tpu.memory_space<vmem>>, vector<1x32xf32>
    %32 = vector.broadcast %31 : vector<1x32xf32> to vector<16x32xf32>
    %33 = arith.addf %30, %32 : vector<16x32xf32>
    %c0_16 = arith.constant 0 : index
    %c0_17 = arith.constant 0 : index
    %34 = vector.load %arg6[%c0_16, %c0_17] : memref<1x32xf32, #tpu.memory_space<vmem>>, vector<1x32xf32>
    %c0_18 = arith.constant 0 : index
    %c0_19 = arith.constant 0 : index
    %35 = vector.load %arg7[%c0_18, %c0_19] : memref<1x32xf32, #tpu.memory_space<vmem>>, vector<1x32xf32>
    %cst_20 = arith.constant dense<0.000000e+00> : vector<16xf32>
    %36 = vector.multi_reduction <add>, %33, %cst_20 [1] : vector<16x32xf32> to vector<16xf32>
    %37 = vector.shape_cast %36 : vector<16xf32> to vector<16x1xf32>
    %38 = arith.mulf %33, %33 : vector<16x32xf32>
    %cst_21 = arith.constant dense<0.000000e+00> : vector<16xf32>
    %39 = vector.multi_reduction <add>, %38, %cst_21 [1] : vector<16x32xf32> to vector<16xf32>
    %40 = vector.shape_cast %39 : vector<16xf32> to vector<16x1xf32>
    %cst_22 = arith.constant 3.125000e-02 : f32
    %41 = vector.broadcast %cst_22 : f32 to vector<16x1xf32>
    %42 = arith.mulf %37, %41 : vector<16x1xf32>
    %cst_23 = arith.constant 3.125000e-02 : f32
    %43 = vector.broadcast %cst_23 : f32 to vector<16x1xf32>
    %44 = arith.mulf %40, %43 : vector<16x1xf32>
    %45 = arith.mulf %42, %42 : vector<16x1xf32>
    %46 = arith.subf %44, %45 : vector<16x1xf32>
    %cst_24 = arith.constant 0.000000e+00 : f32
    %47 = vector.broadcast %cst_24 : f32 to vector<16x1xf32>
    %48 = arith.maximumf %46, %47 : vector<16x1xf32>
    %cst_25 = arith.constant 9.99999974E-6 : f32
    %49 = vector.broadcast %cst_25 : f32 to vector<16x1xf32>
    %50 = arith.addf %48, %49 : vector<16x1xf32>
    %51 = math.rsqrt %50 : vector<16x1xf32>
    %52 = vector.broadcast %34 : vector<1x32xf32> to vector<16x32xf32>
    %53 = vector.broadcast %51 : vector<16x1xf32> to vector<16x32xf32>
    %54 = arith.mulf %52, %53 : vector<16x32xf32>
    %55 = vector.broadcast %42 : vector<16x1xf32> to vector<16x32xf32>
    %56 = arith.subf %33, %55 : vector<16x32xf32>
    %57 = arith.mulf %56, %54 : vector<16x32xf32>
    %58 = vector.broadcast %35 : vector<1x32xf32> to vector<16x32xf32>
    %59 = arith.addf %57, %58 : vector<16x32xf32>
    %cst_26 = arith.constant 0.000000e+00 : f32
    %60 = vector.broadcast %cst_26 : f32 to vector<16x32xf32>
    %61 = arith.maximumf %59, %60 : vector<16x32xf32>
    %c0_27 = arith.constant 0 : index
    %c0_28 = arith.constant 0 : index
    %62 = vector.load %arg8[%c0_27, %c0_28] : memref<32x32xf32, #tpu.memory_space<vmem>>, vector<32x32xf32>
    %cst_29 = arith.constant dense<0.000000e+00> : vector<16x32xf32>
    %63 = tpu.matmul %61, %62, %cst_29 {dimension_numbers = #tpu.dot_dimension_numbers<[1], [0], [0], [1], [0, 0, 1, 1], [], []>} : vector<16x32xf32>, vector<32x32xf32>, vector<16x32xf32> -> vector<16x32xf32>
    %c0_30 = arith.constant 0 : index
    %c0_31 = arith.constant 0 : index
    %64 = vector.load %arg9[%c0_30, %c0_31] : memref<1x32xf32, #tpu.memory_space<vmem>>, vector<1x32xf32>
    %65 = vector.broadcast %64 : vector<1x32xf32> to vector<16x32xf32>
    %66 = arith.addf %63, %65 : vector<16x32xf32>
    %c0_32 = arith.constant 0 : index
    %c0_33 = arith.constant 0 : index
    %67 = vector.load %arg1[%c0_32, %c0_33] : memref<16x32xf32, #tpu.memory_space<vmem>>, vector<16x32xf32>
    %68 = arith.addf %67, %66 : vector<16x32xf32>
    %c0_34 = arith.constant 0 : index
    %c0_35 = arith.constant 0 : index
    %69 = vector.load %arg10[%c0_34, %c0_35] : memref<16x32xf32, #tpu.memory_space<vmem>>, vector<16x32xf32>
    tpu.vector_store %arg10[%c0_34, %c0_35], %68 {strides = array<i32>} : memref<16x32xf32, #tpu.memory_space<vmem>>, vector<16x32xf32>,
    return
  }
  func.func @transform_0(%arg0: i32) -> (i32, i32) {
    %c0_i32 = arith.constant 0 : i32
    %c0_i32_0 = arith.constant 0 : i32
    return %arg0, %c0_i32 : i32, i32
  }
  func.func @transform_1(%arg0: i32) -> (i32, i32) {
    %c0_i32 = arith.constant 0 : i32
    %c0_i32_0 = arith.constant 0 : i32
    %c0_i32_1 = arith.constant 0 : i32
    return %c0_i32, %c0_i32_0 : i32, i32
  }
  func.func @transform_2(%arg0: i32) -> (i32, i32) {
    %c0_i32 = arith.constant 0 : i32
    %c0_i32_0 = arith.constant 0 : i32
    %c0_i32_1 = arith.constant 0 : i32
    return %c0_i32, %c0_i32_0 : i32, i32
  }
  func.func @transform_3(%arg0: i32) -> (i32, i32) {
    %c0_i32 = arith.constant 0 : i32
    %c0_i32_0 = arith.constant 0 : i32
    %c0_i32_1 = arith.constant 0 : i32
    return %c0_i32, %c0_i32_0 : i32, i32
  }
  func.func @transform_4(%arg0: i32) -> (i32, i32) {
    %c0_i32 = arith.constant 0 : i32
    %c0_i32_0 = arith.constant 0 : i32
    %c0_i32_1 = arith.constant 0 : i32
    return %c0_i32, %c0_i32_0 : i32, i32
  }
  func.func @transform_5(%arg0: i32) -> (i32, i32) {
    %c0_i32 = arith.constant 0 : i32
    %c0_i32_0 = arith.constant 0 : i32
    %c0_i32_1 = arith.constant 0 : i32
    return %c0_i32, %c0_i32_0 : i32, i32
  }
  func.func @transform_6(%arg0: i32) -> (i32, i32) {
    %c0_i32 = arith.constant 0 : i32
    %c0_i32_0 = arith.constant 0 : i32
    %c0_i32_1 = arith.constant 0 : i32
    return %c0_i32, %c0_i32_0 : i32, i32
  }
  func.func @transform_7(%arg0: i32) -> (i32, i32) {
    %c0_i32 = arith.constant 0 : i32
    %c0_i32_0 = arith.constant 0 : i32
    %c0_i32_1 = arith.constant 0 : i32
    return %c0_i32, %c0_i32_0 : i32, i32
  }
  func.func @transform_8(%arg0: i32) -> (i32, i32) {
    %c0_i32 = arith.constant 0 : i32
    %c0_i32_0 = arith.constant 0 : i32
    %c0_i32_1 = arith.constant 0 : i32
    return %c0_i32, %c0_i32_0 : i32, i32
  }
  func.func @transform_9(%arg0: i32) -> (i32, i32) {
    %c0_i32 = arith.constant 0 : i32
    %c0_i32_0 = arith.constant 0 : i32
    return %arg0, %c0_i32 : i32, i32
  }
}

</mosaic_0001>

<llo_original>
// kernel: _resident_impl.1
$region0: #{_resident_impl.1}
  #allocation0 [shape = 'u32[]', space=smem, size = 0x4, offset = 0x4, fixed_abs, tag = 'smem constant byte address 0x4 - core index']
  #allocation1 [shape = 'u32[144,128]{1,0:T(1,128)}', space=vmem, size = 0x12000, scoped, tag = 'internal scratch']
  %s0 = inlined_call_operand.hbm [shape: f32[16,32], index: 0, kind: input, shape index: {}]
  %s1 = inlined_call_operand.vmem [shape: f32[1,32], index: 1, kind: input, shape index: {}]
  %s2 = inlined_call_operand.vmem [shape: f32[1,32], index: 2, kind: input, shape index: {}]
  %s3 = inlined_call_operand.hbm [shape: f32[32,32], index: 3, kind: input, shape index: {}]
  %s4 = inlined_call_operand.hbm [shape: f32[1,32], index: 4, kind: input, shape index: {}]
  %s5 = inlined_call_operand.hbm [shape: f32[1,32], index: 5, kind: input, shape index: {}]
  %s6 = inlined_call_operand.hbm [shape: f32[1,32], index: 6, kind: input, shape index: {}]
  %s7 = inlined_call_operand.vmem [shape: f32[32,32], index: 7, kind: input, shape index: {}]
  %s8 = inlined_call_operand.hbm [shape: f32[1,32], index: 8, kind: input, shape index: {}]
  %s9 = inlined_call_operand.hbm [shape: f32[16,32], index: 9, kind: output, shape index: {}]
  %s10 = sld [smem:[#allocation0]]
  $region70: #{_resident_impl.1} parent=0
    _
  %s12 = ssub.s32 1, %s10
  %s13 = scalar_select 0, %s12, %s10
  $region1: #{_resident_impl.1} parent=0
    #allocation2 [shape = 'u8[8192]{0}', space=vmem, size = 0x2000, scoped, tag = 'input window, operand 0, single buffered']
    #allocation3 [shape = 's32[1]{0}', space=sflag, size = 0x4, scoped, tag = 'scoped memory for _resident_impl.1']
    #allocation4 [shape = 's32[1]{0}', space=sflag, size = 0x4, scoped, tag = 'scoped memory for _resident_impl.1']
    #allocation5 [shape = 'u8[16384]{0}', space=vmem, size = 0x4000, scoped, tag = 'input window, operand 3, single buffered']
    #allocation6 [shape = 's32[1]{0}', space=sflag, size = 0x4, scoped, tag = 'scoped memory for _resident_impl.1']
    #allocation7 [shape = 'u8[512]{0}', space=vmem, size = 0x400, scoped, tag = 'input window, operand 4, single buffered']
    #allocation8 [shape = 'u8[512]{0}', space=vmem, size = 0x400, scoped, tag = 'input window, operand 5, single buffered']
    #allocation9 [shape = 's32[1]{0}', space=sflag, size = 0x4, scoped, tag = 'scoped memory for _resident_impl.1']
    #allocation10 [shape = 'u8[512]{0}', space=vmem, size = 0x400, scoped, tag = 'input window, operand 6, single buffered']
    #allocation11 [shape = 'u8[512]{0}', space=vmem, size = 0x400, scoped, tag = 'input window, operand 8, single buffered']
    #allocation12 [shape = 's32[1]{0}', space=sflag, size = 0x4, scoped, tag = 'scoped memory for _resident_impl.1']
    #allocation13 [shape = 'u8[8192]{0}', space=vmem, size = 0x2000, scoped, tag = 'output window, operand 0, single buffered']
    %14 = vsyncpa [#allocation3], 0
    %15 = vsyncpa [#allocation6], 0
    %16 = vsyncpa [#allocation9], 0
    %17 = vsyncpa [#allocation12], 0
    %18 = vsyncpa [#allocation4], 0
    // Predicated region
    $region2: #{_resident_impl.1} parent=1 // pred_check
      _
    $region3: #{_resident_impl.1} parent=1 // pred_check_branch
      %20 = sbr.rel (0) target = $region5
    $region4: #{_resident_impl.1} parent=1 // pred_region
      %s22 = ssub.s32 256, 256
      %23 = vsyncadd [#allocation3], %s22
      %s24 = sshll.u32 [#allocation2], 4
      %s25 = int_to_ptr.vmem [resolvable:$true] %s24
      %30 = dma.hbm_to_vmem [thread:$0]  %s0, 256, %s25, [#allocation3], 128, 128, 8
    $region5: #{_resident_impl.1} parent=1 // pred_fallthru
      _
    // Predicated region
    $region6: #{_resident_impl.1} parent=1 // pred_check
      _
    $region7: #{_resident_impl.1} parent=1 // pred_check_branch
      %32 = sbr.rel (0) target = $region9
    $region8: #{_resident_impl.1} parent=1 // pred_region
      _
    $region9: #{_resident_impl.1} parent=1 // pred_fallthru
      _
    // Predicated region
    $region10: #{_resident_impl.1} parent=1 // pred_check
      _
    $region11: #{_resident_impl.1} parent=1 // pred_check_branch
      %34 = sbr.rel (0) target = $region13
    $region12: #{_resident_impl.1} parent=1 // pred_region
      _
    $region13: #{_resident_impl.1} parent=1 // pred_fallthru
      _
    // Predicated region
    $region14: #{_resident_impl.1} parent=1 // pred_check
      _
    $region15: #{_resident_impl.1} parent=1 // pred_check_branch
      %36 = sbr.rel (0) target = $region17
    $region16: #{_resident_impl.1} parent=1 // pred_region
      %s38 = ssub.s32 512, 512
      %39 = vsyncadd [#allocation6], %s38
      %s40 = sshll.u32 [#allocation5], 4
      %s41 = int_to_ptr.vmem [resolvable:$true] %s40
      %46 = dma.hbm_to_vmem [thread:$0]  %s3, 512, %s41, [#allocation6], 128, 128, 8
    $region17: #{_resident_impl.1} parent=1 // pred_fallthru
      _
    // Predicated region
    $region18: #{_resident_impl.1} parent=1 // pred_check
      _
    $region19: #{_resident_impl.1} parent=1 // pred_check_branch
      %48 = sbr.rel (0) target = $region21
    $region20: #{_resident_impl.1} parent=1 // pred_region
      %s50 = ssub.s32 16, 16
      %51 = vsyncadd [#allocation6], %s50
      %s53 = sshll.u32 [#allocation7], 4
      %s54 = int_to_ptr.vmem [resolvable:$true] %s53
      %56 = dma.hbm_to_vmem [thread:$0]  %s4, 16, %s54, [#allocation6]
    $region21: #{_resident_impl.1} parent=1 // pred_fallthru
      _
    // Predicated region
    $region22: #{_resident_impl.1} parent=1 // pred_check
      _
    $region23: #{_resident_impl.1} parent=1 // pred_check_branch
      %58 = sbr.rel (0) target = $region25
    $region24: #{_resident_impl.1} parent=1 // pred_region
      %s60 = ssub.s32 16, 16
      %61 = vsyncadd [#allocation9], %s60
      %s63 = sshll.u32 [#allocation8], 4
      %s64 = int_to_ptr.vmem [resolvable:$true] %s63
      %66 = dma.hbm_to_vmem [thread:$0]  %s5, 16, %s64, [#allocation9]
    $region25: #{_resident_impl.1} parent=1 // pred_fallthru
      _
    // Predicated region
    $region26: #{_resident_impl.1} parent=1 // pred_check
      _
    $region27: #{_resident_impl.1} parent=1 // pred_check_branch
      %68 = sbr.rel (0) target = $region29
    $region28: #{_resident_impl.1} parent=1 // pred_region
      %s70 = ssub.s32 16, 16
      %71 = vsyncadd [#allocation9], %s70
      %s73 = sshll.u32 [#allocation10], 4
      %s74 = int_to_ptr.vmem [resolvable:$true] %s73
      %76 = dma.hbm_to_vmem [thread:$0]  %s6, 16, %s74, [#allocation9]
    $region29: #{_resident_impl.1} parent=1 // pred_fallthru
      _
    // Predicated region
    $region30: #{_resident_impl.1} parent=1 // pred_check
      _
    $region31: #{_resident_impl.1} parent=1 // pred_check_branch
      %78 = sbr.rel (0) target = $region33
    $region32: #{_resident_impl.1} parent=1 // pred_region
      _
    $region33: #{_resident_impl.1} parent=1 // pred_fallthru
      _
    // Predicated region
    $region34: #{_resident_impl.1} parent=1 // pred_check
      _
    $region35: #{_resident_impl.1} parent=1 // pred_check_branch
      %80 = sbr.rel (0) target = $region37
    $region36: #{_resident_impl.1} parent=1 // pred_region
      %s82 = ssub.s32 16, 16
      %83 = vsyncadd [#allocation12], %s82
      %s85 = sshll.u32 [#allocation11], 4
      %s86 = int_to_ptr.vmem [resolvable:$true] %s85
      %88 = dma.hbm_to_vmem [thread:$0]  %s8, 16, %s86, [#allocation12]
    $region37: #{_resident_impl.1} parent=1 // pred_fallthru
      _
    // Predicated region
    $region38: #{_resident_impl.1} parent=1 // pred_check
      _
    $region39: #{_resident_impl.1} parent=1 // pred_check_branch
      %90 = sbr.rel (0) target = $region41
    $region40: #{_resident_impl.1} parent=1 // pred_region
      %91 = dma.done [#allocation3], 256
    $region41: #{_resident_impl.1} parent=1 // pred_fallthru
      _
    // Predicated region
    $region42: #{_resident_impl.1} parent=1 // pred_check
      _
    $region43: #{_resident_impl.1} parent=1 // pred_check_branch
      %93 = sbr.rel (0) target = $region45
    $region44: #{_resident_impl.1} parent=1 // pred_region
      %94 = dma.done [#allocation6], 512
    $region45: #{_resident_impl.1} parent=1 // pred_fallthru
      _
    // Predicated region
    $region46: #{_resident_impl.1} parent=1 // pred_check
      _
    $region47: #{_resident_impl.1} parent=1 // pred_check_branch
      %96 = sbr.rel (0) target = $region49
    $region48: #{_resident_impl.1} parent=1 // pred_region
      %97 = dma.done [#allocation6], 16
    $region49: #{_resident_impl.1} parent=1 // pred_fallthru
      _
    // Predicated region
    $region50: #{_resident_impl.1} parent=1 // pred_check
      _
    $region51: #{_resident_impl.1} parent=1 // pred_check_branch
      %99 = sbr.rel (0) target = $region53
    $region52: #{_resident_impl.1} parent=1 // pred_region
      %100 = dma.done [#allocation9], 16
    $region53: #{_resident_impl.1} parent=1 // pred_fallthru
      _
    // Predicated region
    $region54: #{_resident_impl.1} parent=1 // pred_check
      _
    $region55: #{_resident_impl.1} parent=1 // pred_check_branch
      %102 = sbr.rel (0) target = $region57
    $region56: #{_resident_impl.1} parent=1 // pred_region
      %103 = dma.done [#allocation9], 16
    $region57: #{_resident_impl.1} parent=1 // pred_fallthru
      _
    // Predicated region
    $region58: #{_resident_impl.1} parent=1 // pred_check
      _
    $region59: #{_resident_impl.1} parent=1 // pred_check_branch
      %105 = sbr.rel (0) target = $region61
    $region60: #{_resident_impl.1} parent=1 // pred_region
      %106 = dma.done [#allocation12], 16
    $region61: #{_resident_impl.1} parent=1 // pred_fallthru
      _
    %v107 = vld [vmem:[#allocation2] sm:$0xff]
    %v108 = vld [vmem:[#allocation2 + $0x8] sm:$0xff]
    %v109 = vld [vmem:[%s1] sm:$0x1]
    %v110 = vld [vmem:[%s2] sm:$0x1]
    %vm111 = vcmask 261120
    %v112 = vsel %vm111, %v107, 0.0
    %113 = vadd.xlane.f32.xlu0 %v112
    %v114 = vpop.xlane.xlu0 %113
    %v115 = vsel %vm111, %v108, 0.0
    %116 = vadd.xlane.f32.xlu0 %v115
    %v117 = vpop.xlane.xlu0 %116
    %v118 = vmul.f32 %v107, %v107
    %v119 = vmul.f32 %v108, %v108
    %v120 = vsel %vm111, %v118, 0.0
    %121 = vadd.xlane.f32.xlu0 %v120
    %v122 = vpop.xlane.xlu0 %121
    %v123 = vsel %vm111, %v119, 0.0
    %124 = vadd.xlane.f32.xlu0 %v123
    %v125 = vpop.xlane.xlu0 %124
    %v126 = vmul.f32 %v114, 0.03125
    %v127 = vmul.f32 %v117, 0.03125
    %v128 = vmul.f32 %v122, 0.03125
    %v129 = vmul.f32 %v125, 0.03125
    %v130 = vmul.f32 %v126, %v126
    %v131 = vmul.f32 %v127, %v127
    %v132 = vsub.f32 %v128, %v130
    %v133 = vsub.f32 %v129, %v131
    %v134 = vmax.f32 %v132, 0.0
    %v135 = vmax.f32 %v133, 0.0
    %v136 = vadd.f32 %v134, 1e-05
    %v137 = vadd.f32 %v135, 1e-05
    %v138 = vrsqrt.pop %v136
    %v139 = vrsqrt.pop %v137
    %v141 = vlaneseq
    %v142 = vshrl.u32 %v141, 7
    %v143 = vsub.s32 0, %v142
    %v144 = vrot.slane %v109, %v143
    %v146 = vmul.f32 %v144, %v138
    %v147 = vmul.f32 %v144, %v139
    %v148 = vsub.f32 %v107, %v126
    %v149 = vsub.f32 %v108, %v127
    %v150 = vmul.f32 %v148, %v146
    %v151 = vmul.f32 %v149, %v147
    %v153 = vlaneseq
    %v154 = vshrl.u32 %v153, 7
    %v155 = vsub.s32 0, %v154
    %v156 = vrot.slane %v110, %v155
    %v158 = vadd.f32 %v150, %v156
    %v159 = vadd.f32 %v151, %v156
    %v160 = vmax.f32 %v158, 0.0
    %v161 = vmax.f32 %v159, 0.0
    %v162 = vld [vmem:[#allocation5] sm:$0xff]
    %v163 = vld [vmem:[#allocation5 + $0x8] sm:$0xff]
    %v164 = vld [vmem:[#allocation5 + $0x10] sm:$0xff]
    %v165 = vld [vmem:[#allocation5 + $0x18] sm:$0xff]
    %v166 = vld [vmem:[#allocation7] sm:$0x1]
    %v168 = vlaneseq
    %v169 = vshrl.u32 %v168, 7
    %v170 = vsub.s32 0, %v169
    %v171 = vrot.slane %v166, %v170
    %v174 = vsel %vm111, %v160, 0
    %v177 = vsel %vm111, %v161, 0
    %179 = vmatprep.subr.mxu0 0.0
    %180 = vmatpush1.msra.mxu0 %v162
    %181 = vmatprep.subr.mxu0 0.0
    %182 = vmatpush1.msra.mxu0 %v163
    %183 = vmatprep.subr.mxu0 0.0
    %184 = vmatpush1.msra.mxu0 %v164
    %185 = vmatprep.subr.mxu0 0.0
    %186 = vmatpush1.msra.mxu0 %v165
    %187 = vmatprep.subr.mxu0 0.0
    %188 = vmatpush1.msra.mxu0 0.0
    %189 = vmatprep.subr.mxu0 0.0
    %190 = vmatpush1.msra.mxu0 0.0
    %191 = vmatprep.subr.mxu0 0.0
    %192 = vmatpush1.msra.mxu0 0.0
    %193 = vmatprep.subr.mxu0 0.0
    %194 = vmatpush1.msra.mxu0 0.0
    %195 = vmatprep.subr.mxu0 0.0
    %196 = vmatpush1.msra.mxu0 0.0
    %197 = vmatprep.subr.mxu0 0.0
    %198 = vmatpush1.msra.mxu0 0.0
    %199 = vmatprep.subr.mxu0 0.0
    %200 = vmatpush1.msra.mxu0 0.0
    %201 = vmatprep.subr.mxu0 0.0
    %202 = vmatpush1.msra.mxu0 0.0
    %203 = vmatprep.subr.mxu0 0.0
    %204 = vmatpush1.msra.mxu0 0.0
    %205 = vmatprep.subr.mxu0 0.0
    %206 = vmatpush1.msra.mxu0 0.0
    %207 = vmatprep.subr.mxu0 0.0
    %208 = vmatpush1.msra.mxu0 0.0
    %209 = vmatprep.subr.mxu0 0.0
    %210 = vmatpush1.msra.mxu0 0.0
    %211 = vmatprep.subr.mxu0 0.0
    %212 = vmatpush1.msra.mxu0 0.0
    %213 = vmatprep.subr.mxu0 0.0
    %214 = vmatpush1.msra.mxu0 0.0
    %215 = vmatprep.subr.mxu0 0.0
    %216 = vmatpush1.msra.mxu0 0.0
    %217 = vmatprep.subr.mxu0 0.0
    %218 = vmatpush1.msra.mxu0 0.0
    %219 = vmatprep.subr.mxu0 0.0
    %220 = vmatpush1.msra.mxu0 0.0
    %221 = vmatprep.subr.mxu0 0.0
    %222 = vmatpush1.msra.mxu0 0.0
    %223 = vmatprep.subr.mxu0 0.0
    %224 = vmatpush1.msra.mxu0 0.0
    %225 = vmatprep.subr.mxu0 0.0
    %226 = vmatpush1.msra.mxu0 0.0
    %227 = vmatprep.subr.mxu0 0.0
    %228 = vmatpush1.msra.mxu0 0.0
    %229 = vmatprep.subr.mxu0 0.0
    %230 = vmatpush1.msra.mxu0 0.0
    %231 = vmatprep.subr.mxu0 0.0
    %232 = vmatpush1.msra.mxu0 0.0
    %233 = vmatprep.subr.mxu0 0.0
    %234 = vmatpush1.msra.mxu0 0.0
    %235 = vmatprep.subr.mxu0 0.0
    %236 = vmatpush1.msra.mxu0 0.0
    %237 = vmatprep.subr.mxu0 0.0
    %238 = vmatpush1.msra.mxu0 0.0
    %239 = vmatprep.subr.mxu0 0.0
    %240 = vmatpush1.msra.mxu0 0.0
    %241 = vmatprep.subr.mxu0 0.0
    %242 = vmatpush1.msra.mxu0 0.0
    %243 = vmatprep.mubr.f32.mxu0 0.0
    %244 = vmatmul.mubr.f32.gmra.mrb[0].mxu0 %v174
    %v245 = vpop.f32.mrb[0].mxu0
    %v246 = vadd.f32 %v171, %v245
    %v247 = vpop.f32.mrb[0].mxu0
    %248 = vmatprep.mubr.f32.mxu0 0.0
    %249 = vmatmul.mubr.f32.gmra.mrb[0].mxu0 %v177
    %v250 = vpop.f32.mrb[0].mxu0
    %v251 = vadd.f32 %v171, %v250
    %v252 = vpop.f32.mrb[0].mxu0
    %253 = vdwg.mxu0
    %v254 = vld [vmem:[#allocation8] sm:$0x1]
    %v255 = vld [vmem:[#allocation10] sm:$0x1]
    %v256 = vsel %vm111, %v246, 0.0
    %257 = vadd.xlane.f32.xlu0 %v256
    %v258 = vpop.xlane.xlu0 %257
    %v259 = vsel %vm111, %v251, 0.0
    %260 = vadd.xlane.f32.xlu0 %v259
    %v261 = vpop.xlane.xlu0 %260
    %v262 = vmul.f32 %v246, %v246
    %v263 = vmul.f32 %v251, %v251
    %v264 = vsel %vm111, %v262, 0.0
    %265 = vadd.xlane.f32.xlu0 %v264
    %v266 = vpop.xlane.xlu0 %265
    %v267 = vsel %vm111, %v263, 0.0
    %268 = vadd.xlane.f32.xlu0 %v267
    %v269 = vpop.xlane.xlu0 %268
    %v270 = vmul.f32 %v258, 0.03125
    %v271 = vmul.f32 %v261, 0.03125
    %v272 = vmul.f32 %v266, 0.03125
    %v273 = vmul.f32 %v269, 0.03125
    %v274 = vmul.f32 %v270, %v270
    %v275 = vmul.f32 %v271, %v271
    %v276 = vsub.f32 %v272, %v274
    %v277 = vsub.f32 %v273, %v275
    %v278 = vmax.f32 %v276, 0.0
    %v279 = vmax.f32 %v277, 0.0
    %v280 = vadd.f32 %v278, 1e-05
    %v281 = vadd.f32 %v279, 1e-05
    %v282 = vrsqrt.pop %v280
    %v283 = vrsqrt.pop %v281
    %v285 = vlaneseq
    %v286 = vshrl.u32 %v285, 7
    %v287 = vsub.s32 0, %v286
    %v288 = vrot.slane %v254, %v287
    %v290 = vmul.f32 %v288, %v282
    %v291 = vmul.f32 %v288, %v283
    %v292 = vsub.f32 %v246, %v270
    %v293 = vsub.f32 %v251, %v271
    %v294 = vmul.f32 %v292, %v290
    %v295 = vmul.f32 %v293, %v291
    %v297 = vlaneseq
    %v298 = vshrl.u32 %v297, 7
    %v299 = vsub.s32 0, %v298
    %v300 = vrot.slane %v255, %v299
    %v302 = vadd.f32 %v294, %v300
    %v303 = vadd.f32 %v295, %v300
    %v304 = vmax.f32 %v302, 0.0
    %v305 = vmax.f32 %v303, 0.0
    %v306 = vld [vmem:[%s7] sm:$0xff]
    %v307 = vld [vmem:[%s7 + $0x8] sm:$0xff]
    %v308 = vld [vmem:[%s7 + $0x10] sm:$0xff]
    %v309 = vld [vmem:[%s7 + $0x18] sm:$0xff]
    %v310 = vld [vmem:[#allocation11] sm:$0x1]
    %v312 = vlaneseq
    %v313 = vshrl.u32 %v312, 7
    %v314 = vsub.s32 0, %v313
    %v315 = vrot.slane %v310, %v314
    %v318 = vsel %vm111, %v304, 0
    %v321 = vsel %vm111, %v305, 0
    %323 = vmatprep.subr.mxu0 0.0
    %324 = vmatpush1.msra.mxu0 %v306
    %325 = vmatprep.subr.mxu0 0.0
    %326 = vmatpush1.msra.mxu0 %v307
    %327 = vmatprep.subr.mxu0 0.0
    %328 = vmatpush1.msra.mxu0 %v308
    %329 = vmatprep.subr.mxu0 0.0
    %330 = vmatpush1.msra.mxu0 %v309
    %331 = vmatprep.subr.mxu0 0.0
    %332 = vmatpush1.msra.mxu0 0.0
    %333 = vmatprep.subr.mxu0 0.0
    %334 = vmatpush1.msra.mxu0 0.0
    %335 = vmatprep.subr.mxu0 0.0
    %336 = vmatpush1.msra.mxu0 0.0
    %337 = vmatprep.subr.mxu0 0.0
    %338 = vmatpush1.msra.mxu0 0.0
    %339 = vmatprep.subr.mxu0 0.0
    %340 = vmatpush1.msra.mxu0 0.0
    %341 = vmatprep.subr.mxu0 0.0
    %342 = vmatpush1.msra.mxu0 0.0
    %343 = vmatprep.subr.mxu0 0.0
    %344 = vmatpush1.msra.mxu0 0.0
    %345 = vmatprep.subr.mxu0 0.0
    %346 = vmatpush1.msra.mxu0 0.0
    %347 = vmatprep.subr.mxu0 0.0
    %348 = vmatpush1.msra.mxu0 0.0
    %349 = vmatprep.subr.mxu0 0.0
    %350 = vmatpush1.msra.mxu0 0.0
    %351 = vmatprep.subr.mxu0 0.0
    %352 = vmatpush1.msra.mxu0 0.0
    %353 = vmatprep.subr.mxu0 0.0
    %354 = vmatpush1.msra.mxu0 0.0
    %355 = vmatprep.subr.mxu0 0.0
    %356 = vmatpush1.msra.mxu0 0.0
    %357 = vmatprep.subr.mxu0 0.0
    %358 = vmatpush1.msra.mxu0 0.0
    %359 = vmatprep.subr.mxu0 0.0
    %360 = vmatpush1.msra.mxu0 0.0
    %361 = vmatprep.subr.mxu0 0.0
    %362 = vmatpush1.msra.mxu0 0.0
    %363 = vmatprep.subr.mxu0 0.0
    %364 = vmatpush1.msra.mxu0 0.0
    %365 = vmatprep.subr.mxu0 0.0
    %366 = vmatpush1.msra.mxu0 0.0
    %367 = vmatprep.subr.mxu0 0.0
    %368 = vmatpush1.msra.mxu0 0.0
    %369 = vmatprep.subr.mxu0 0.0
    %370 = vmatpush1.msra.mxu0 0.0
    %371 = vmatprep.subr.mxu0 0.0
    %372 = vmatpush1.msra.mxu0 0.0
    %373 = vmatprep.subr.mxu0 0.0
    %374 = vmatpush1.msra.mxu0 0.0
    %375 = vmatprep.subr.mxu0 0.0
    %376 = vmatpush1.msra.mxu0 0.0
    %377 = vmatprep.subr.mxu0 0.0
    %378 = vmatpush1.msra.mxu0 0.0
    %379 = vmatprep.subr.mxu0 0.0
    %380 = vmatpush1.msra.mxu0 0.0
    %381 = vmatprep.subr.mxu0 0.0
    %382 = vmatpush1.msra.mxu0 0.0
    %383 = vmatprep.subr.mxu0 0.0
    %384 = vmatpush1.msra.mxu0 0.0
    %385 = vmatprep.subr.mxu0 0.0
    %386 = vmatpush1.msra.mxu0 0.0
    %387 = vmatprep.mubr.f32.mxu0 0.0
    %388 = vmatmul.mubr.f32.gmra.mrb[0].mxu0 %v318
    %v389 = vpop.f32.mrb[0].mxu0
    %v390 = vadd.f32 %v315, %v389
    %v391 = vpop.f32.mrb[0].mxu0
    %392 = vmatprep.mubr.f32.mxu0 0.0
    %393 = vmatmul.mubr.f32.gmra.mrb[0].mxu0 %v321
    %v394 = vpop.f32.mrb[0].mxu0
    %v395 = vadd.f32 %v315, %v394
    %v396 = vpop.f32.mrb[0].mxu0
    %397 = vdwg.mxu0
    %v398 = vadd.f32 %v107, %v390
    %v399 = vadd.f32 %v108, %v395
    %400 = vst.msk [vmem:[#allocation13] sm:$0xff] %vm111, %v398
    %401 = vst.msk [vmem:[#allocation13 + $0x8] sm:$0xff] %vm111, %v399
    // Predicated region
    $region62: #{_resident_impl.1} parent=1 // pred_check
      _
    $region63: #{_resident_impl.1} parent=1 // pred_check_branch
      %403 = sbr.rel (0) target = $region65
    $region64: #{_resident_impl.1} parent=1 // pred_region
      %s405 = ssub.s32 256, 256
      %406 = vsyncadd [#allocation4], %s405
      %s407 = sshll.u32 [#allocation13], 4
      %s408 = int_to_ptr.vmem [resolvable:$true] %s407
      %413 = dma.vmem_to_hbm [thread:$0]  %s408, 256, %s9, [#allocation4], 128, 128, 8
    $region65: #{_resident_impl.1} parent=1 // pred_fallthru
      _
    // Predicated region
    $region66: #{_resident_impl.1} parent=1 // pred_check
      _
    $region67: #{_resident_impl.1} parent=1 // pred_check_branch
      %415 = sbr.rel (0) target = $region69
    $region68: #{_resident_impl.1} parent=1 // pred_region
      %416 = dma.done [#allocation4], 256
    $region69: #{_resident_impl.1} parent=1 // pred_fallthru
      _
    %417 = vsyncpa [#allocation3], 1
    %418 = vsyncpa [#allocation6], 1
    %419 = vsyncpa [#allocation9], 1
    %420 = vsyncpa [#allocation12], 1
    %421 = vsyncpa [#allocation4], 1

</llo_original>
